<compile_context>
chip_gen: v5e
topology: v5e:2x2
jax: 0.10.0
libtpu: 0.0.40
codegen_flags: <defaults>
</compile_context>

<pallas_src>
import functools

import jax
import jax.numpy as jnp
import numpy as np
from jax.experimental import pallas as pl
from jax.experimental.pallas import tpu as pltpu

_EPS = 1e-5  # nn.BatchNorm2d default eps


def _basic_block_kernel(has_proj, H, W, x_ref, w1_ref, w2_ref, *rest):
    # x_ref  : (Cp, L)       f32, L = N*H*W, Cp = Cin padded to a multiple of 8
    # w1_ref : (Cm, 9*Cp)    bf16 im2col-packed conv1 weight (tap-major columns)
    # w2_ref : (Cm, 9*Cm)    bf16 im2col-packed conv2 weight
    # ws_ref : (Cm, Cp)      bf16 1x1 projection weight (only when has_proj)
    # bn_ref : (6, Cm, 1)    f32 rows = [g1, b1, g2, b2, gs, bs]
    # out_ref: (Cm, L)       f32 (lane-dense store)
    if has_proj:
        ws_ref, bn_ref, out_ref = rest
    else:
        ws_ref = None
        bn_ref, out_ref = rest

    L = x_ref.shape[1]
    HW = H * W
    inv_l = 1.0 / L
    taps = [(dh, dw) for dh in (-1, 0, 1) for dw in (-1, 0, 1)]

    # Per-tap border-validity masks generated in-kernel (cheap VPU compares on
    # iota) — no HBM traffic, no 8x sublane-padded (1, L) slabs.
    pix = jax.lax.broadcasted_iota(jnp.int32, (1, L), 1)
    sp = pix % HW          # spatial index inside one image
    wi = pix % W           # column index inside one row
    masks = []
    for dh, dw in taps:
        conds = []
        if dh == -1:
            conds.append(sp >= W)
        if dh == 1:
            conds.append(sp < HW - W)
        if dw == -1:
            conds.append(wi >= 1)
        if dw == 1:
            conds.append(wi < W - 1)
        if conds:
            v = conds[0]
            for c in conds[1:]:
                v = v & c
            masks.append(v.astype(jnp.float32))
        else:
            masks.append(None)  # centre tap: always valid, no mask

    def im2col(act):
        # act: (c, L) f32  ->  (9*c, L) bf16 im2col slab.
        # Rolls go to the XLU, masks fold into the small input rows (f32
        # elementwise), and only the final MXU operand is cast to bf16.
        rows = []
        for k, (dh, dw) in enumerate(taps):
            shift = dh * W + dw                      # flat offset of this tap
            t = act if shift == 0 else pltpu.roll(act, (-shift) % L, axis=1)
            if masks[k] is not None:
                t = t * masks[k]                     # kill out-of-image taps
            rows.append(t)
        # c is a multiple of 8 -> tile-aligned sublane concatenation.
        return jnp.concatenate(rows, axis=0).astype(jnp.bfloat16)

    def batch_norm(y, gamma, beta):
        # Training-mode BN, one-pass biased batch stats over all L pixels:
        # sum and sum-of-squares in the same sweep, rsqrt on the EUP, single
        # fused scale/shift VPU pass over the activation.
        mean = jnp.sum(y, axis=1, keepdims=True) * inv_l
        mean_sq = jnp.sum(y * y, axis=1, keepdims=True) * inv_l
        var = mean_sq - mean * mean
        scale = gamma * jax.lax.rsqrt(var + _EPS)
        shift = beta - mean * scale
        return y * scale + shift

    # ---- conv1: one (Cm, 9*Cp) x (9*Cp, L) MXU matmul -> bn1 -> relu ----
    y1 = jnp.dot(w1_ref[...], im2col(x_ref[...]),
                 preferred_element_type=jnp.float32)
    y1 = jnp.maximum(batch_norm(y1, bn_ref[0], bn_ref[1]), 0.0)

    # ---- conv2 -> bn2 ----
    y2 = jnp.dot(w2_ref[...], im2col(y1), preferred_element_type=jnp.float32)
    y2 = batch_norm(y2, bn_ref[2], bn_ref[3])

    # ---- shortcut ----
    if has_proj:
        sc = jnp.dot(ws_ref[...], x_ref[...].astype(jnp.bfloat16),
                     preferred_element_type=jnp.float32)
        sc = batch_norm(sc, bn_ref[4], bn_ref[5])
    else:
        sc = x_ref[...]                      # identity shortcut, exact f32

    out_ref[...] = jnp.maximum(y2 + sc, 0.0).astype(out_ref.dtype)


def basic_block_forward(x_nchw, params, stride=1):
    """BasicBlock forward. x_nchw: (N, Cin, H, W) f32 -> (N, Cm, H, W) f32."""
    if stride != 1:
        # TODO(synk): strided (downsampling) conv path not implemented in this kernel.
        raise NotImplementedError("stride != 1 not supported")
    N, Cin, H, W = x_nchw.shape
    Cm = params["w1"].shape[-1]
    if Cm % 8 != 0:
        # TODO(synk): general (non multiple-of-8) planes would need output-channel padding.
        raise NotImplementedError("planes must be a multiple of 8")
    has_proj = (Cin != Cm) or (stride != 1)
    L = N * H * W
    Cp = -(-Cin // 8) * 8   # pad input channels to the f32 sublane tile so the
                            # in-kernel im2col concatenation stays tile-aligned

    # Channels -> sublanes, flattened pixels -> lanes.
    # TODO(synk): at real ResNet sizes keep activations in (C, L) between blocks
    # (or fold this axis swap into a gridded BlockSpec index_map) to avoid one
    # full HBM round-trip of the activation outside the kernel.
    x2d = jnp.transpose(x_nchw, (1, 0, 2, 3)).reshape(Cin, L)
    if Cp != Cin:
        x2d = jnp.pad(x2d, ((0, Cp - Cin), (0, 0)))

    # im2col-packed bf16 weights: columns grouped tap-major then channel, so a
    # single matmul per conv replaces nine tiny per-tap matmuls.
    def pack3x3(w_hwio, cin, cpad):
        w = w_hwio.reshape(9, cin, Cm)
        if cpad != cin:
            w = jnp.pad(w, ((0, 0), (0, cpad - cin), (0, 0)))
        return (jnp.transpose(w, (2, 0, 1))
                .reshape(Cm, 9 * cpad).astype(jnp.bfloat16))

    w1 = pack3x3(params["w1"], Cin, Cp)          # (Cm, 9*Cp)
    w2 = pack3x3(params["w2"], Cm, Cm)           # (Cm, 9*Cm)
    bn = jnp.stack([params["g1"], params["b1"], params["g2"], params["b2"],
                    params["gs"], params["bs"]], axis=0).astype(jnp.float32)[..., None]

    inputs = [x2d, w1, w2]
    if has_proj:  # only DMA the projection weight when the shortcut needs it
        ws = jnp.transpose(params["ws"].reshape(Cin, Cm))        # (Cm, Cin)
        if Cp != Cin:
            ws = jnp.pad(ws, ((0, 0), (0, Cp - Cin)))
        inputs.append(ws.astype(jnp.bfloat16))
    inputs.append(bn)

    # TODO(synk): for production ResNet shapes add a grid over N / pixel-row
    # tiles (halo via index_map) with a two-pass BN reduction, mark it
    # "parallel" for v7x's 2 TensorCores, and re-derive tile sizes /
    # vmem_limit_bytes for its 64 MiB VMEM (vs 128 MiB on v5e/v6e).  At these
    # shapes a single invocation fits comfortably everywhere.
    out2d = pl.pallas_call(
        functools.partial(_basic_block_kernel, has_proj, H, W),
        out_shape=jax.ShapeDtypeStruct((Cm, L), jnp.float32),
        in_specs=[pl.BlockSpec(memory_space=pltpu.MemorySpace.VMEM)] * len(inputs),
        out_specs=pl.BlockSpec(memory_space=pltpu.MemorySpace.VMEM),
        compiler_params=pltpu.CompilerParams(vmem_limit_bytes=32 * 1024 * 1024),
    )(*inputs)

    return jnp.transpose(out2d.reshape(Cm, N, H, W), (1, 0, 2, 3))


def init_params(key, in_planes, planes):
    """Deterministic synthetic init (shapes match the PyTorch module)."""
    k1, k2, k3, k4 = jax.random.split(key, 4)

    def conv_w(k, kh, kw, cin, cout):
        fan_in = kh * kw * cin
        return (jax.random.normal(k, (kh, kw, cin, cout), jnp.float32)
                * np.sqrt(2.0 / fan_in))

    kg = jax.random.split(k4, 6)
    return {
        "w1": conv_w(k1, 3, 3, in_planes, planes),
        "w2": conv_w(k2, 3, 3, planes, planes),
        "ws": conv_w(k3, 1, 1, in_planes, planes),
        "g1": 1.0 + 0.1 * jax.random.normal(kg[0], (planes,), jnp.float32),
        "b1": 0.1 * jax.random.normal(kg[1], (planes,), jnp.float32),
        "g2": 1.0 + 0.1 * jax.random.normal(kg[2], (planes,), jnp.float32),
        "b2": 0.1 * jax.random.normal(kg[3], (planes,), jnp.float32),
        "gs": 1.0 + 0.1 * jax.random.normal(kg[4], (planes,), jnp.float32),
        "bs": 0.1 * jax.random.normal(kg[5], (planes,), jnp.float32),
    }


def reference_forward(x, params, stride=1):
    """Pure-JAX reference matching the PyTorch BasicBlock.forward (train-mode BN)."""
    def conv(y, w_hwio, s, pad):
        return jax.lax.conv_general_dilated(
            y, w_hwio, window_strides=(s, s), padding=pad,
            dimension_numbers=("NCHW", "HWIO", "NCHW"),
            precision=jax.lax.Precision.HIGHEST)

    def bn(y, g, b):
        mean = jnp.mean(y, axis=(0, 2, 3), keepdims=True)
        var = jnp.mean((y - mean) ** 2, axis=(0, 2, 3), keepdims=True)
        return ((y - mean) * jax.lax.rsqrt(var + _EPS)
                * g.reshape(1, -1, 1, 1) + b.reshape(1, -1, 1, 1))

    Cin = x.shape[1]
    Cm = params["w1"].shape[-1]
    out = jax.nn.relu(bn(conv(x, params["w1"], stride, ((1, 1), (1, 1))),
                         params["g1"], params["b1"]))
    out = bn(conv(out, params["w2"], 1, ((1, 1), (1, 1))),
             params["g2"], params["b2"])
    if Cin != Cm or stride != 1:
        sc = bn(conv(x, params["ws"], stride, ((0, 0), (0, 0))),
                params["gs"], params["bs"])
    else:
        sc = x
    return jax.nn.relu(out + sc)


if __name__ == "__main__":
    key = jax.random.PRNGKey(0)
    kx1, kp1, kx2, kp2 = jax.random.split(key, 4)

    # Case 1: projection shortcut (in_planes != planes).
    N, Cin, H, W = 2, 4, 16, 16
    planes = 8
    x1 = jax.random.normal(kx1, (N, Cin, H, W), jnp.float32)
    p1 = init_params(kp1, Cin, planes)
    out1 = jax.block_until_ready(basic_block_forward(x1, p1, stride=1))
    ref1 = reference_forward(x1, p1, stride=1)
    assert out1.shape == (N, planes, H, W)
    # bf16 MXU operands -> slightly looser tolerance vs f32/HIGHEST reference.
    np.testing.assert_allclose(np.asarray(out1), np.asarray(ref1),
                               rtol=3e-2, atol=3e-2)

    # Case 2: identity shortcut (in_planes == planes).
    x2 = jax.random.normal(kx2, (N, planes, H, W), jnp.float32)
    p2 = init_params(kp2, planes, planes)
    out2 = jax.block_until_ready(basic_block_forward(x2, p2, stride=1))
    ref2 = reference_forward(x2, p2, stride=1)
    np.testing.assert_allclose(np.asarray(out2), np.asarray(ref2),
                               rtol=3e-2, atol=3e-2)

    print("KERNEL_OK")
</pallas_src>

<mosaic_0001>
module attributes {stable_mosaic.version = 11 : i64} {
  func.func @_basic_block_kernel(%arg0: memref<8x512xf32, #tpu.memory_space<vmem>>, %arg1: memref<8x72xbf16, #tpu.memory_space<vmem>>, %arg2: memref<8x72xbf16, #tpu.memory_space<vmem>>, %arg3: memref<8x8xbf16, #tpu.memory_space<vmem>>, %arg4: memref<6x8x1xf32, #tpu.memory_space<vmem>>, %arg5: memref<8x512xf32, #tpu.memory_space<vmem>>) attributes {dimension_semantics = [], scalar_prefetch = 0 : i64, scratch_operands = 0 : i64, tpu.core_type = #tpu.core_type<tc>} {
    %0 = tpu.iota {dimensions = array<i32: 1>} : vector<1x512xi32>
    %c256_i32 = arith.constant 256 : i32
    %c0_i32 = arith.constant 0 : i32
    %1 = arith.cmpi eq, %c256_i32, %c0_i32 : i32
    %c1_i32 = arith.constant 1 : i32
    %2 = arith.select %1, %c1_i32, %c256_i32 : i32
    %3 = vector.broadcast %2 : i32 to vector<1x512xi32>
    %4 = arith.remsi %0, %3 : vector<1x512xi32>
    %c0_i32_0 = arith.constant 0 : i32
    %5 = vector.broadcast %c0_i32_0 : i32 to vector<1x512xi32>
    %6 = arith.cmpi ne, %4, %5 : vector<1x512xi32>
    %c0_i32_1 = arith.constant 0 : i32
    %7 = vector.broadcast %c0_i32_1 : i32 to vector<1x512xi32>
    %8 = arith.cmpi slt, %4, %7 : vector<1x512xi32>
    %c0_i32_2 = arith.constant 0 : i32
    %9 = arith.cmpi slt, %2, %c0_i32_2 : i32
    %10 = vector.broadcast %9 : i1 to vector<1x512xi1>
    %11 = vector.broadcast %10 : vector<1x512xi1> to vector<1x512xi1>
    %12 = arith.xori %8, %11 : vector<1x512xi1>
    %13 = arith.andi %12, %6 : vector<1x512xi1>
    %14 = vector.broadcast %2 : i32 to vector<1x512xi32>
    %15 = arith.addi %4, %14 : vector<1x512xi32>
    %16 = arith.select %13, %15, %4 : vector<1x512xi1>, vector<1x512xi32>
    %c16_i32 = arith.constant 16 : i32
    %c0_i32_3 = arith.constant 0 : i32
    %17 = arith.cmpi eq, %c16_i32, %c0_i32_3 : i32
    %c1_i32_4 = arith.constant 1 : i32
    %18 = arith.select %17, %c1_i32_4, %c16_i32 : i32
    %19 = vector.broadcast %18 : i32 to vector<1x512xi32>
    %20 = arith.remsi %0, %19 : vector<1x512xi32>
    %c0_i32_5 = arith.constant 0 : i32
    %21 = vector.broadcast %c0_i32_5 : i32 to vector<1x512xi32>
    %22 = arith.cmpi ne, %20, %21 : vector<1x512xi32>
    %c0_i32_6 = arith.constant 0 : i32
    %23 = vector.broadcast %c0_i32_6 : i32 to vector<1x512xi32>
    %24 = arith.cmpi slt, %20, %23 : vector<1x512xi32>
    %c0_i32_7 = arith.constant 0 : i32
    %25 = arith.cmpi slt, %18, %c0_i32_7 : i32
    %26 = vector.broadcast %25 : i1 to vector<1x512xi1>
    %27 = vector.broadcast %26 : vector<1x512xi1> to vector<1x512xi1>
    %28 = arith.xori %24, %27 : vector<1x512xi1>
    %29 = arith.andi %28, %22 : vector<1x512xi1>
    %30 = vector.broadcast %18 : i32 to vector<1x512xi32>
    %31 = arith.addi %20, %30 : vector<1x512xi32>
    %32 = arith.select %29, %31, %20 : vector<1x512xi1>, vector<1x512xi32>
    %c16_i32_8 = arith.constant 16 : i32
    %33 = vector.broadcast %c16_i32_8 : i32 to vector<1x512xi32>
    %34 = arith.cmpi sge, %16, %33 : vector<1x512xi32>
    %c1_i32_9 = arith.constant 1 : i32
    %35 = vector.broadcast %c1_i32_9 : i32 to vector<1x512xi32>
    %36 = arith.cmpi sge, %32, %35 : vector<1x512xi32>
    %37 = arith.andi %34, %36 : vector<1x512xi1>
    %38 = arith.extui %37 : vector<1x512xi1> to vector<1x512xi32>
    %39 = arith.sitofp %38 : vector<1x512xi32> to vector<1x512xf32>
    %c16_i32_10 = arith.constant 16 : i32
    %40 = vector.broadcast %c16_i32_10 : i32 to vector<1x512xi32>
    %41 = arith.cmpi sge, %16, %40 : vector<1x512xi32>
    %42 = arith.extui %41 : vector<1x512xi1> to vector<1x512xi32>
    %43 = arith.sitofp %42 : vector<1x512xi32> to vector<1x512xf32>
    %c16_i32_11 = arith.constant 16 : i32
    %44 = vector.broadcast %c16_i32_11 : i32 to vector<1x512xi32>
    %45 = arith.cmpi sge, %16, %44 : vector<1x512xi32>
    %c15_i32 = arith.constant 15 : i32
    %46 = vector.broadcast %c15_i32 : i32 to vector<1x512xi32>
    %47 = arith.cmpi slt, %32, %46 : vector<1x512xi32>
    %48 = arith.andi %45, %47 : vector<1x512xi1>
    %49 = arith.extui %48 : vector<1x512xi1> to vector<1x512xi32>
    %50 = arith.sitofp %49 : vector<1x512xi32> to vector<1x512xf32>
    %c1_i32_12 = arith.constant 1 : i32
    %51 = vector.broadcast %c1_i32_12 : i32 to vector<1x512xi32>
    %52 = arith.cmpi sge, %32, %51 : vector<1x512xi32>
    %53 = arith.extui %52 : vector<1x512xi1> to vector<1x512xi32>
    %54 = arith.sitofp %53 : vector<1x512xi32> to vector<1x512xf32>
    %c15_i32_13 = arith.constant 15 : i32
    %55 = vector.broadcast %c15_i32_13 : i32 to vector<1x512xi32>
    %56 = arith.cmpi slt, %32, %55 : vector<1x512xi32>
    %57 = arith.extui %56 : vector<1x512xi1> to vector<1x512xi32>
    %58 = arith.sitofp %57 : vector<1x512xi32> to vector<1x512xf32>
    %c240_i32 = arith.constant 240 : i32
    %59 = vector.broadcast %c240_i32 : i32 to vector<1x512xi32>
    %60 = arith.cmpi slt, %16, %59 : vector<1x512xi32>
    %c1_i32_14 = arith.constant 1 : i32
    %61 = vector.broadcast %c1_i32_14 : i32 to vector<1x512xi32>
    %62 = arith.cmpi sge, %32, %61 : vector<1x512xi32>
    %63 = arith.andi %60, %62 : vector<1x512xi1>
    %64 = arith.extui %63 : vector<1x512xi1> to vector<1x512xi32>
    %65 = arith.sitofp %64 : vector<1x512xi32> to vector<1x512xf32>
    %c240_i32_15 = arith.constant 240 : i32
    %66 = vector.broadcast %c240_i32_15 : i32 to vector<1x512xi32>
    %67 = arith.cmpi slt, %16, %66 : vector<1x512xi32>
    %68 = arith.extui %67 : vector<1x512xi1> to vector<1x512xi32>
    %69 = arith.sitofp %68 : vector<1x512xi32> to vector<1x512xf32>
    %c240_i32_16 = arith.constant 240 : i32
    %70 = vector.broadcast %c240_i32_16 : i32 to vector<1x512xi32>
    %71 = arith.cmpi slt, %16, %70 : vector<1x512xi32>
    %c15_i32_17 = arith.constant 15 : i32
    %72 = vector.broadcast %c15_i32_17 : i32 to vector<1x512xi32>
    %73 = arith.cmpi slt, %32, %72 : vector<1x512xi32>
    %74 = arith.andi %71, %73 : vector<1x512xi1>
    %75 = arith.extui %74 : vector<1x512xi1> to vector<1x512xi32>
    %76 = arith.sitofp %75 : vector<1x512xi32> to vector<1x512xf32>
    %c0 = arith.constant 0 : index
    %c0_18 = arith.constant 0 : index
    %77 = vector.load %arg1[%c0, %c0_18] : memref<8x72xbf16, #tpu.memory_space<vmem>>, vector<8x72xbf16>
    %c0_19 = arith.constant 0 : index
    %c0_20 = arith.constant 0 : index
    %78 = vector.load %arg0[%c0_19, %c0_20] : memref<8x512xf32, #tpu.memory_space<vmem>>, vector<8x512xf32>
    %c17_i32 = arith.constant 17 : i32
    %79 = tpu.dynamic_rotate %78 by %c17_i32 dim 1 : vector<8x512xf32>, i32 -> vector<8x512xf32>
    %80 = vector.broadcast %39 : vector<1x512xf32> to vector<8x512xf32>
    %81 = arith.mulf %79, %80 : vector<8x512xf32>
    %c16_i32_21 = arith.constant 16 : i32
    %82 = tpu.dynamic_rotate %78 by %c16_i32_21 dim 1 : vector<8x512xf32>, i32 -> vector<8x512xf32>
    %83 = vector.broadcast %43 : vector<1x512xf32> to vector<8x512xf32>
    %84 = arith.mulf %82, %83 : vector<8x512xf32>
    %c15_i32_22 = arith.constant 15 : i32
    %85 = tpu.dynamic_rotate %78 by %c15_i32_22 dim 1 : vector<8x512xf32>, i32 -> vector<8x512xf32>
    %86 = vector.broadcast %50 : vector<1x512xf32> to vector<8x512xf32>
    %87 = arith.mulf %85, %86 : vector<8x512xf32>
    %c1_i32_23 = arith.constant 1 : i32
    %88 = tpu.dynamic_rotate %78 by %c1_i32_23 dim 1 : vector<8x512xf32>, i32 -> vector<8x512xf32>
    %89 = vector.broadcast %54 : vector<1x512xf32> to vector<8x512xf32>
    %90 = arith.mulf %88, %89 : vector<8x512xf32>
    %c511_i32 = arith.constant 511 : i32
    %91 = tpu.dynamic_rotate %78 by %c511_i32 dim 1 : vector<8x512xf32>, i32 -> vector<8x512xf32>
    %92 = vector.broadcast %58 : vector<1x512xf32> to vector<8x512xf32>
    %93 = arith.mulf %91, %92 : vector<8x512xf32>
    %c497_i32 = arith.constant 497 : i32
    %94 = tpu.dynamic_rotate %78 by %c497_i32 dim 1 : vector<8x512xf32>, i32 -> vector<8x512xf32>
    %95 = vector.broadcast %65 : vector<1x512xf32> to vector<8x512xf32>
    %96 = arith.mulf %94, %95 : vector<8x512xf32>
    %c496_i32 = arith.constant 496 : i32
    %97 = tpu.dynamic_rotate %78 by %c496_i32 dim 1 : vector<8x512xf32>, i32 -> vector<8x512xf32>
    %98 = vector.broadcast %69 : vector<1x512xf32> to vector<8x512xf32>
    %99 = arith.mulf %97, %98 : vector<8x512xf32>
    %c495_i32 = arith.constant 495 : i32
    %100 = tpu.dynamic_rotate %78 by %c495_i32 dim 1 : vector<8x512xf32>, i32 -> vector<8x512xf32>
    %101 = vector.broadcast %76 : vector<1x512xf32> to vector<8x512xf32>
    %102 = arith.mulf %100, %101 : vector<8x512xf32>
    %103 = tpu.concatenate %81, %84, %87, %90, %78, %93, %96, %99, %102 in 0 : vector<8x512xf32>, vector<8x512xf32>, vector<8x512xf32>, vector<8x512xf32>, vector<8x512xf32>, vector<8x512xf32>, vector<8x512xf32>, vector<8x512xf32>, vector<8x512xf32> -> vector<72x512xf32>
    %104 = arith.truncf %103 : vector<72x512xf32> to vector<72x512xbf16>
    %cst = arith.constant dense<0.000000e+00> : vector<8x512xf32>
    %105 = tpu.matmul %77, %104, %cst {dimension_numbers = #tpu.dot_dimension_numbers<[1], [0], [0], [1], [0, 0, 1, 1], [], []>} : vector<8x72xbf16>, vector<72x512xbf16>, vector<8x512xf32> -> vector<8x512xf32>
    %c0_24 = arith.constant 0 : index
    %c0_25 = arith.constant 0 : index
    %c0_26 = arith.constant 0 : index
    %106 = vector.load %arg4[%c0_24, %c0_25, %c0_26] : memref<6x8x1xf32, #tpu.memory_space<vmem>>, vector<1x8x1xf32>
    %107 = vector.shape_cast %106 : vector<1x8x1xf32> to vector<8x1xf32>
    %c1 = arith.constant 1 : index
    %c0_27 = arith.constant 0 : index
    %c0_28 = arith.constant 0 : index
    %108 = vector.load %arg4[%c1, %c0_27, %c0_28] : memref<6x8x1xf32, #tpu.memory_space<vmem>>, vector<1x8x1xf32>
    %109 = vector.shape_cast %108 : vector<1x8x1xf32> to vector<8x1xf32>
    %cst_29 = arith.constant dense<0.000000e+00> : vector<8xf32>
    %110 = vector.multi_reduction <add>, %105, %cst_29 [1] : vector<8x512xf32> to vector<8xf32>
    %111 = vector.shape_cast %110 : vector<8xf32> to vector<8x1xf32>
    %cst_30 = arith.constant 0.001953125 : f32
    %112 = vector.broadcast %cst_30 : f32 to vector<8x1xf32>
    %113 = arith.mulf %111, %112 : vector<8x1xf32>
    %114 = arith.mulf %105, %105 : vector<8x512xf32>
    %cst_31 = arith.constant dense<0.000000e+00> : vector<8xf32>
    %115 = vector.multi_reduction <add>, %114, %cst_31 [1] : vector<8x512xf32> to vector<8xf32>
    %116 = vector.shape_cast %115 : vector<8xf32> to vector<8x1xf32>
    %cst_32 = arith.constant 0.001953125 : f32
    %117 = vector.broadcast %cst_32 : f32 to vector<8x1xf32>
    %118 = arith.mulf %116, %117 : vector<8x1xf32>
    %119 = arith.mulf %113, %113 : vector<8x1xf32>
    %120 = arith.subf %118, %119 : vector<8x1xf32>
    %cst_33 = arith.constant 9.99999974E-6 : f32
    %121 = vector.broadcast %cst_33 : f32 to vector<8x1xf32>
    %122 = arith.addf %120, %121 : vector<8x1xf32>
    %123 = math.rsqrt %122 : vector<8x1xf32>
    %124 = arith.mulf %107, %123 : vector<8x1xf32>
    %125 = arith.mulf %113, %124 : vector<8x1xf32>
    %126 = arith.subf %109, %125 : vector<8x1xf32>
    %127 = vector.broadcast %124 : vector<8x1xf32> to vector<8x512xf32>
    %128 = arith.mulf %105, %127 : vector<8x512xf32>
    %129 = vector.broadcast %126 : vector<8x1xf32> to vector<8x512xf32>
    %130 = arith.addf %128, %129 : vector<8x512xf32>
    %cst_34 = arith.constant 0.000000e+00 : f32
    %131 = vector.broadcast %cst_34 : f32 to vector<8x512xf32>
    %132 = arith.maximumf %130, %131 : vector<8x512xf32>
    %c0_35 = arith.constant 0 : index
    %c0_36 = arith.constant 0 : index
    %133 = vector.load %arg2[%c0_35, %c0_36] : memref<8x72xbf16, #tpu.memory_space<vmem>>, vector<8x72xbf16>
    %c17_i32_37 = arith.constant 17 : i32
    %134 = tpu.dynamic_rotate %132 by %c17_i32_37 dim 1 : vector<8x512xf32>, i32 -> vector<8x512xf32>
    %135 = vector.broadcast %39 : vector<1x512xf32> to vector<8x512xf32>
    %136 = arith.mulf %134, %135 : vector<8x512xf32>
    %c16_i32_38 = arith.constant 16 : i32
    %137 = tpu.dynamic_rotate %132 by %c16_i32_38 dim 1 : vector<8x512xf32>, i32 -> vector<8x512xf32>
    %138 = vector.broadcast %43 : vector<1x512xf32> to vector<8x512xf32>
    %139 = arith.mulf %137, %138 : vector<8x512xf32>
    %c15_i32_39 = arith.constant 15 : i32
    %140 = tpu.dynamic_rotate %132 by %c15_i32_39 dim 1 : vector<8x512xf32>, i32 -> vector<8x512xf32>
    %141 = vector.broadcast %50 : vector<1x512xf32> to vector<8x512xf32>
    %142 = arith.mulf %140, %141 : vector<8x512xf32>
    %c1_i32_40 = arith.constant 1 : i32
    %143 = tpu.dynamic_rotate %132 by %c1_i32_40 dim 1 : vector<8x512xf32>, i32 -> vector<8x512xf32>
    %144 = vector.broadcast %54 : vector<1x512xf32> to vector<8x512xf32>
    %145 = arith.mulf %143, %144 : vector<8x512xf32>
    %c511_i32_41 = arith.constant 511 : i32
    %146 = tpu.dynamic_rotate %132 by %c511_i32_41 dim 1 : vector<8x512xf32>, i32 -> vector<8x512xf32>
    %147 = vector.broadcast %58 : vector<1x512xf32> to vector<8x512xf32>
    %148 = arith.mulf %146, %147 : vector<8x512xf32>
    %c497_i32_42 = arith.constant 497 : i32
    %149 = tpu.dynamic_rotate %132 by %c497_i32_42 dim 1 : vector<8x512xf32>, i32 -> vector<8x512xf32>
    %150 = vector.broadcast %65 : vector<1x512xf32> to vector<8x512xf32>
    %151 = arith.mulf %149, %150 : vector<8x512xf32>
    %c496_i32_43 = arith.constant 496 : i32
    %152 = tpu.dynamic_rotate %132 by %c496_i32_43 dim 1 : vector<8x512xf32>, i32 -> vector<8x512xf32>
    %153 = vector.broadcast %69 : vector<1x512xf32> to vector<8x512xf32>
    %154 = arith.mulf %152, %153 : vector<8x512xf32>
    %c495_i32_44 = arith.constant 495 : i32
    %155 = tpu.dynamic_rotate %132 by %c495_i32_44 dim 1 : vector<8x512xf32>, i32 -> vector<8x512xf32>
    %156 = vector.broadcast %76 : vector<1x512xf32> to vector<8x512xf32>
    %157 = arith.mulf %155, %156 : vector<8x512xf32>
    %158 = tpu.concatenate %136, %139, %142, %145, %132, %148, %151, %154, %157 in 0 : vector<8x512xf32>, vector<8x512xf32>, vector<8x512xf32>, vector<8x512xf32>, vector<8x512xf32>, vector<8x512xf32>, vector<8x512xf32>, vector<8x512xf32>, vector<8x512xf32> -> vector<72x512xf32>
    %159 = arith.truncf %158 : vector<72x512xf32> to vector<72x512xbf16>
    %cst_45 = arith.constant dense<0.000000e+00> : vector<8x512xf32>
    %160 = tpu.matmul %133, %159, %cst_45 {dimension_numbers = #tpu.dot_dimension_numbers<[1], [0], [0], [1], [0, 0, 1, 1], [], []>} : vector<8x72xbf16>, vector<72x512xbf16>, vector<8x512xf32> -> vector<8x512xf32>
    %c2 = arith.constant 2 : index
    %c0_46 = arith.constant 0 : index
    %c0_47 = arith.constant 0 : index
    %161 = vector.load %arg4[%c2, %c0_46, %c0_47] : memref<6x8x1xf32, #tpu.memory_space<vmem>>, vector<1x8x1xf32>
    %162 = vector.shape_cast %161 : vector<1x8x1xf32> to vector<8x1xf32>
    %c3 = arith.constant 3 : index
    %c0_48 = arith.constant 0 : index
    %c0_49 = arith.constant 0 : index
    %163 = vector.load %arg4[%c3, %c0_48, %c0_49] : memref<6x8x1xf32, #tpu.memory_space<vmem>>, vector<1x8x1xf32>
    %164 = vector.shape_cast %163 : vector<1x8x1xf32> to vector<8x1xf32>
    %cst_50 = arith.constant dense<0.000000e+00> : vector<8xf32>
    %165 = vector.multi_reduction <add>, %160, %cst_50 [1] : vector<8x512xf32> to vector<8xf32>
    %166 = vector.shape_cast %165 : vector<8xf32> to vector<8x1xf32>
    %cst_51 = arith.constant 0.001953125 : f32
    %167 = vector.broadcast %cst_51 : f32 to vector<8x1xf32>
    %168 = arith.mulf %166, %167 : vector<8x1xf32>
    %169 = arith.mulf %160, %160 : vector<8x512xf32>
    %cst_52 = arith.constant dense<0.000000e+00> : vector<8xf32>
    %170 = vector.multi_reduction <add>, %169, %cst_52 [1] : vector<8x512xf32> to vector<8xf32>
    %171 = vector.shape_cast %170 : vector<8xf32> to vector<8x1xf32>
    %cst_53 = arith.constant 0.001953125 : f32
    %172 = vector.broadcast %cst_53 : f32 to vector<8x1xf32>
    %173 = arith.mulf %171, %172 : vector<8x1xf32>
    %174 = arith.mulf %168, %168 : vector<8x1xf32>
    %175 = arith.subf %173, %174 : vector<8x1xf32>
    %cst_54 = arith.constant 9.99999974E-6 : f32
    %176 = vector.broadcast %cst_54 : f32 to vector<8x1xf32>
    %177 = arith.addf %175, %176 : vector<8x1xf32>
    %178 = math.rsqrt %177 : vector<8x1xf32>
    %179 = arith.mulf %162, %178 : vector<8x1xf32>
    %180 = arith.mulf %168, %179 : vector<8x1xf32>
    %181 = arith.subf %164, %180 : vector<8x1xf32>
    %182 = vector.broadcast %179 : vector<8x1xf32> to vector<8x512xf32>
    %183 = arith.mulf %160, %182 : vector<8x512xf32>
    %184 = vector.broadcast %181 : vector<8x1xf32> to vector<8x512xf32>
    %185 = arith.addf %183, %184 : vector<8x512xf32>
    %c0_55 = arith.constant 0 : index
    %c0_56 = arith.constant 0 : index
    %186 = vector.load %arg3[%c0_55, %c0_56] : memref<8x8xbf16, #tpu.memory_space<vmem>>, vector<8x8xbf16>
    %c0_57 = arith.constant 0 : index
    %c0_58 = arith.constant 0 : index
    %187 = vector.load %arg0[%c0_57, %c0_58] : memref<8x512xf32, #tpu.memory_space<vmem>>, vector<8x512xf32>
    %188 = arith.truncf %187 : vector<8x512xf32> to vector<8x512xbf16>
    %cst_59 = arith.constant dense<0.000000e+00> : vector<8x512xf32>
    %189 = tpu.matmul %186, %188, %cst_59 {dimension_numbers = #tpu.dot_dimension_numbers<[1], [0], [0], [1], [0, 0, 1, 1], [], []>} : vector<8x8xbf16>, vector<8x512xbf16>, vector<8x512xf32> -> vector<8x512xf32>
    %c4 = arith.constant 4 : index
    %c0_60 = arith.constant 0 : index
    %c0_61 = arith.constant 0 : index
    %190 = vector.load %arg4[%c4, %c0_60, %c0_61] : memref<6x8x1xf32, #tpu.memory_space<vmem>>, vector<1x8x1xf32>
    %191 = vector.shape_cast %190 : vector<1x8x1xf32> to vector<8x1xf32>
    %c5 = arith.constant 5 : index
    %c0_62 = arith.constant 0 : index
    %c0_63 = arith.constant 0 : index
    %192 = vector.load %arg4[%c5, %c0_62, %c0_63] : memref<6x8x1xf32, #tpu.memory_space<vmem>>, vector<1x8x1xf32>
    %193 = vector.shape_cast %192 : vector<1x8x1xf32> to vector<8x1xf32>
    %cst_64 = arith.constant dense<0.000000e+00> : vector<8xf32>
    %194 = vector.multi_reduction <add>, %189, %cst_64 [1] : vector<8x512xf32> to vector<8xf32>
    %195 = vector.shape_cast %194 : vector<8xf32> to vector<8x1xf32>
    %cst_65 = arith.constant 0.001953125 : f32
    %196 = vector.broadcast %cst_65 : f32 to vector<8x1xf32>
    %197 = arith.mulf %195, %196 : vector<8x1xf32>
    %198 = arith.mulf %189, %189 : vector<8x512xf32>
    %cst_66 = arith.constant dense<0.000000e+00> : vector<8xf32>
    %199 = vector.multi_reduction <add>, %198, %cst_66 [1] : vector<8x512xf32> to vector<8xf32>
    %200 = vector.shape_cast %199 : vector<8xf32> to vector<8x1xf32>
    %cst_67 = arith.constant 0.001953125 : f32
    %201 = vector.broadcast %cst_67 : f32 to vector<8x1xf32>
    %202 = arith.mulf %200, %201 : vector<8x1xf32>
    %203 = arith.mulf %197, %197 : vector<8x1xf32>
    %204 = arith.subf %202, %203 : vector<8x1xf32>
    %cst_68 = arith.constant 9.99999974E-6 : f32
    %205 = vector.broadcast %cst_68 : f32 to vector<8x1xf32>
    %206 = arith.addf %204, %205 : vector<8x1xf32>
    %207 = math.rsqrt %206 : vector<8x1xf32>
    %208 = arith.mulf %191, %207 : vector<8x1xf32>
    %209 = arith.mulf %197, %208 : vector<8x1xf32>
    %210 = arith.subf %193, %209 : vector<8x1xf32>
    %211 = vector.broadcast %208 : vector<8x1xf32> to vector<8x512xf32>
    %212 = arith.mulf %189, %211 : vector<8x512xf32>
    %213 = vector.broadcast %210 : vector<8x1xf32> to vector<8x512xf32>
    %214 = arith.addf %212, %213 : vector<8x512xf32>
    %215 = arith.addf %185, %214 : vector<8x512xf32>
    %cst_69 = arith.constant 0.000000e+00 : f32
    %216 = vector.broadcast %cst_69 : f32 to vector<8x512xf32>
    %217 = arith.maximumf %215, %216 : vector<8x512xf32>
    %c0_70 = arith.constant 0 : index
    %c0_71 = arith.constant 0 : index
    %218 = vector.load %arg5[%c0_70, %c0_71] : memref<8x512xf32, #tpu.memory_space<vmem>>, vector<8x512xf32>
    tpu.vector_store %arg5[%c0_70, %c0_71], %217 {strides = array<i32>} : memref<8x512xf32, #tpu.memory_space<vmem>>, vector<8x512xf32>,
    return
  }
}

</mosaic_0001>

<llo_original>
// kernel: tpu_custom_call.1
$region0: #{tpu_custom_call.1}
  #allocation0 [shape = 'u32[]', space=smem, size = 0x4, offset = 0x4, fixed_abs, tag = 'smem constant byte address 0x4 - core index']
  #allocation1 [shape = 'u32[72,128]{1,0:T(1,128)}', space=vmem, size = 0x9000, scoped, tag = 'internal scratch']
  %s0 = inlined_call_operand.vmem [shape: f32[8,512], index: 0, kind: input, shape index: {}]
  %s1 = inlined_call_operand.vmem [shape: bf16[8,72], index: 1, kind: input, shape index: {}]
  %s2 = inlined_call_operand.vmem [shape: bf16[8,72], index: 2, kind: input, shape index: {}]
  %s3 = inlined_call_operand.vmem [shape: bf16[8,8], index: 3, kind: input, shape index: {}]
  %s4 = inlined_call_operand.vmem [shape: f32[6,8,1], index: 4, kind: input, shape index: {}]
  %s5 = inlined_call_operand.hbm [shape: f32[8,512], index: 5, kind: output, shape index: {}]
  %s6 = sld [smem:[#allocation0]]
  $region30: #{tpu_custom_call.1} parent=0
    _
  %s8 = ssub.s32 1, %s6
  %s9 = scalar_select 0, %s8, %s6
  $region1: #{tpu_custom_call.1} parent=0
    #allocation2 [shape = 'u8[16384]{0}', space=vmem, size = 0x4000, scoped, tag = 'output window, operand 0, single buffered']
    #allocation3 [shape = 's32[1]{0}', space=sflag, size = 0x4, scoped, tag = 'scoped memory for tpu_custom_call.1']
    %10 = vsyncpa [#allocation3], 0
    // Predicated region
    $region2: #{tpu_custom_call.1} parent=1 // pred_check
      _
    $region3: #{tpu_custom_call.1} parent=1 // pred_check_branch
      %12 = sbr.rel (0) target = $region5
    $region4: #{tpu_custom_call.1} parent=1 // pred_region
      _
    $region5: #{tpu_custom_call.1} parent=1 // pred_fallthru
      _
    // Predicated region
    $region6: #{tpu_custom_call.1} parent=1 // pred_check
      _
    $region7: #{tpu_custom_call.1} parent=1 // pred_check_branch
      %14 = sbr.rel (0) target = $region9
    $region8: #{tpu_custom_call.1} parent=1 // pred_region
      _
    $region9: #{tpu_custom_call.1} parent=1 // pred_fallthru
      _
    // Predicated region
    $region10: #{tpu_custom_call.1} parent=1 // pred_check
      _
    $region11: #{tpu_custom_call.1} parent=1 // pred_check_branch
      %16 = sbr.rel (0) target = $region13
    $region12: #{tpu_custom_call.1} parent=1 // pred_region
      _
    $region13: #{tpu_custom_call.1} parent=1 // pred_fallthru
      _
    // Predicated region
    $region14: #{tpu_custom_call.1} parent=1 // pred_check
      _
    $region15: #{tpu_custom_call.1} parent=1 // pred_check_branch
      %18 = sbr.rel (0) target = $region17
    $region16: #{tpu_custom_call.1} parent=1 // pred_region
      _
    $region17: #{tpu_custom_call.1} parent=1 // pred_fallthru
      _
    // Predicated region
    $region18: #{tpu_custom_call.1} parent=1 // pred_check
      _
    $region19: #{tpu_custom_call.1} parent=1 // pred_check_branch
      %20 = sbr.rel (0) target = $region21
    $region20: #{tpu_custom_call.1} parent=1 // pred_region
      _
    $region21: #{tpu_custom_call.1} parent=1 // pred_fallthru
      _
    %v22 = vlaneseq
    %v23 = vand.u32 %v22, 127
    %v24 = vadd.s32 %v23, 128
    %v25 = vadd.s32 %v23, 256
    %v26 = vadd.s32 %v23, 384
    %vm27 = vcmp.lt.s32.totalorder %v23, 0
    %v28 = vsub.s32 0, %v23
    %v29 = vsel %vm27, %v28, %v23
    %v30 = vshrl.u32 %v29, 8
    %v31 = vand.u32 %v29, 255
    %v32 = vsub.s32 0, %v31
    %v33 = vsel %vm27, %v32, %v31
    %vm34 = vcmp.lt.s32.totalorder %v24, 0
    %v35 = vsub.s32 0, %v24
    %v36 = vsel %vm34, %v35, %v24
    %v37 = vshrl.u32 %v36, 8
    %v38 = vand.u32 %v36, 255
    %v39 = vsub.s32 0, %v38
    %v40 = vsel %vm34, %v39, %v38
    %vm41 = vcmp.lt.s32.totalorder %v25, 0
    %v42 = vsub.s32 0, %v25
    %v43 = vsel %vm41, %v42, %v25
    %v44 = vshrl.u32 %v43, 8
    %v45 = vand.u32 %v43, 255
    %v46 = vsub.s32 0, %v45
    %v47 = vsel %vm41, %v46, %v45
    %vm48 = vcmp.lt.s32.totalorder %v26, 0
    %v49 = vsub.s32 0, %v26
    %v50 = vsel %vm48, %v49, %v26
    %v51 = vshrl.u32 %v50, 8
    %v52 = vand.u32 %v50, 255
    %v53 = vsub.s32 0, %v52
    %v54 = vsel %vm48, %v53, %v52
    %vm55 = vcmp.ne.s32.totalorder %v33, 0
    %vm56 = vcmp.ne.s32.totalorder %v40, 0
    %vm57 = vcmp.ne.s32.totalorder %v47, 0
    %vm58 = vcmp.ne.s32.totalorder %v54, 0
    %vm59 = vcmp.lt.s32.totalorder %v33, 0
    %vm60 = vcmp.lt.s32.totalorder %v40, 0
    %vm61 = vcmp.lt.s32.totalorder %v47, 0
    %vm62 = vcmp.lt.s32.totalorder %v54, 0
    %vm63 = vmand %vm59, %vm55
    %vm64 = vmand %vm60, %vm56
    %vm65 = vmand %vm61, %vm57
    %vm66 = vmand %vm62, %vm58
    %v67 = vadd.s32 %v33, 256
    %v68 = vadd.s32 %v40, 256
    %v69 = vadd.s32 %v47, 256
    %v70 = vadd.s32 %v54, 256
    %v71 = vsel %vm63, %v67, %v33
    %v72 = vsel %vm64, %v68, %v40
    %v73 = vsel %vm65, %v69, %v47
    %v74 = vsel %vm66, %v70, %v54
    %vm75 = vcmp.lt.s32.totalorder %v23, 0
    %v76 = vsub.s32 0, %v23
    %v77 = vsel %vm75, %v76, %v23
    %v78 = vshrl.u32 %v77, 4
    %v79 = vand.u32 %v77, 15
    %v80 = vsub.s32 0, %v79
    %v81 = vsel %vm75, %v80, %v79
    %vm82 = vcmp.lt.s32.totalorder %v24, 0
    %v83 = vsub.s32 0, %v24
    %v84 = vsel %vm82, %v83, %v24
    %v85 = vshrl.u32 %v84, 4
    %v86 = vand.u32 %v84, 15
    %v87 = vsub.s32 0, %v86
    %v88 = vsel %vm82, %v87, %v86
    %vm89 = vcmp.lt.s32.totalorder %v25, 0
    %v90 = vsub.s32 0, %v25
    %v91 = vsel %vm89, %v90, %v25
    %v92 = vshrl.u32 %v91, 4
    %v93 = vand.u32 %v91, 15
    %v94 = vsub.s32 0, %v93
    %v95 = vsel %vm89, %v94, %v93
    %vm96 = vcmp.lt.s32.totalorder %v26, 0
    %v97 = vsub.s32 0, %v26
    %v98 = vsel %vm96, %v97, %v26
    %v99 = vshrl.u32 %v98, 4
    %v100 = vand.u32 %v98, 15
    %v101 = vsub.s32 0, %v100
    %v102 = vsel %vm96, %v101, %v100
    %vm103 = vcmp.ne.s32.totalorder %v81, 0
    %vm104 = vcmp.ne.s32.totalorder %v88, 0
    %vm105 = vcmp.ne.s32.totalorder %v95, 0
    %vm106 = vcmp.ne.s32.totalorder %v102, 0
    %vm107 = vcmp.lt.s32.totalorder %v81, 0
    %vm108 = vcmp.lt.s32.totalorder %v88, 0
    %vm109 = vcmp.lt.s32.totalorder %v95, 0
    %vm110 = vcmp.lt.s32.totalorder %v102, 0
    %vm111 = vmand %vm107, %vm103
    %vm112 = vmand %vm108, %vm104
    %vm113 = vmand %vm109, %vm105
    %vm114 = vmand %vm110, %vm106
    %v115 = vadd.s32 %v81, 16
    %v116 = vadd.s32 %v88, 16
    %v117 = vadd.s32 %v95, 16
    %v118 = vadd.s32 %v102, 16
    %v119 = vsel %vm111, %v115, %v81
    %v120 = vsel %vm112, %v116, %v88
    %v121 = vsel %vm113, %v117, %v95
    %v122 = vsel %vm114, %v118, %v102
    %vm123 = vcmp.ge.s32.totalorder %v71, 16
    %vm124 = vcmp.ge.s32.totalorder %v72, 16
    %vm125 = vcmp.ge.s32.totalorder %v73, 16
    %vm126 = vcmp.ge.s32.totalorder %v74, 16
    %vm127 = vcmp.ge.s32.totalorder %v119, 1
    %vm128 = vcmp.ge.s32.totalorder %v120, 1
    %vm129 = vcmp.ge.s32.totalorder %v121, 1
    %vm130 = vcmp.ge.s32.totalorder %v122, 1
    %vm131 = vmand %vm123, %vm127
    %vm132 = vmand %vm124, %vm128
    %vm133 = vmand %vm125, %vm129
    %vm134 = vmand %vm126, %vm130
    %v135 = vsel %vm131, 1, 0
    %v136 = vsel %vm132, 1, 0
    %v137 = vsel %vm133, 1, 0
    %v138 = vsel %vm134, 1, 0
    %v139 = vcvt.s32.f32 %v135
    %v140 = vcvt.s32.f32 %v136
    %v141 = vcvt.s32.f32 %v137
    %v142 = vcvt.s32.f32 %v138
    %v143 = vsel %vm123, 1, 0
    %v144 = vsel %vm124, 1, 0
    %v145 = vsel %vm125, 1, 0
    %v146 = vsel %vm126, 1, 0
    %v147 = vcvt.s32.f32 %v143
    %v148 = vcvt.s32.f32 %v144
    %v149 = vcvt.s32.f32 %v145
    %v150 = vcvt.s32.f32 %v146
    %vm151 = vcmp.lt.s32.totalorder %v119, 15
    %vm152 = vcmp.lt.s32.totalorder %v120, 15
    %vm153 = vcmp.lt.s32.totalorder %v121, 15
    %vm154 = vcmp.lt.s32.totalorder %v122, 15
    %vm155 = vmand %vm123, %vm151
    %vm156 = vmand %vm124, %vm152
    %vm157 = vmand %vm125, %vm153
    %vm158 = vmand %vm126, %vm154
    %v159 = vsel %vm155, 1, 0
    %v160 = vsel %vm156, 1, 0
    %v161 = vsel %vm157, 1, 0
    %v162 = vsel %vm158, 1, 0
    %v163 = vcvt.s32.f32 %v159
    %v164 = vcvt.s32.f32 %v160
    %v165 = vcvt.s32.f32 %v161
    %v166 = vcvt.s32.f32 %v162
    %v167 = vsel %vm127, 1, 0
    %v168 = vsel %vm128, 1, 0
    %v169 = vsel %vm129, 1, 0
    %v170 = vsel %vm130, 1, 0
    %v171 = vcvt.s32.f32 %v167
    %v172 = vcvt.s32.f32 %v168
    %v173 = vcvt.s32.f32 %v169
    %v174 = vcvt.s32.f32 %v170
    %v175 = vsel %vm151, 1, 0
    %v176 = vsel %vm152, 1, 0
    %v177 = vsel %vm153, 1, 0
    %v178 = vsel %vm154, 1, 0
    %v179 = vcvt.s32.f32 %v175
    %v180 = vcvt.s32.f32 %v176
    %v181 = vcvt.s32.f32 %v177
    %v182 = vcvt.s32.f32 %v178
    %vm183 = vcmp.lt.s32.totalorder %v71, 240
    %vm184 = vcmp.lt.s32.totalorder %v72, 240
    %vm185 = vcmp.lt.s32.totalorder %v73, 240
    %vm186 = vcmp.lt.s32.totalorder %v74, 240
    %vm187 = vmand %vm183, %vm127
    %vm188 = vmand %vm184, %vm128
    %vm189 = vmand %vm185, %vm129
    %vm190 = vmand %vm186, %vm130
    %v191 = vsel %vm187, 1, 0
    %v192 = vsel %vm188, 1, 0
    %v193 = vsel %vm189, 1, 0
    %v194 = vsel %vm190, 1, 0
    %v195 = vcvt.s32.f32 %v191
    %v196 = vcvt.s32.f32 %v192
    %v197 = vcvt.s32.f32 %v193
    %v198 = vcvt.s32.f32 %v194
    %v199 = vsel %vm183, 1, 0
    %v200 = vsel %vm184, 1, 0
    %v201 = vsel %vm185, 1, 0
    %v202 = vsel %vm186, 1, 0
    %v203 = vcvt.s32.f32 %v199
    %v204 = vcvt.s32.f32 %v200
    %v205 = vcvt.s32.f32 %v201
    %v206 = vcvt.s32.f32 %v202
    %vm207 = vmand %vm183, %vm151
    %vm208 = vmand %vm184, %vm152
    %vm209 = vmand %vm185, %vm153
    %vm210 = vmand %vm186, %vm154
    %v211 = vsel %vm207, 1, 0
    %v212 = vsel %vm208, 1, 0
    %v213 = vsel %vm209, 1, 0
    %v214 = vsel %vm210, 1, 0
    %v215 = vcvt.s32.f32 %v211
    %v216 = vcvt.s32.f32 %v212
    %v217 = vcvt.s32.f32 %v213
    %v218 = vcvt.s32.f32 %v214
    %v219 = vld [vmem:[%s1] sm:$0xf]
    %v220 = vld [vmem:[%s0] sm:$0xff]
    %v221 = vld [vmem:[%s0 + $0x8] sm:$0xff]
    %v222 = vld [vmem:[%s0 + $0x10] sm:$0xff]
    %v223 = vld [vmem:[%s0 + $0x18] sm:$0xff]
    %224 = vrot.lane.b32.xlu0 %v220, 17
    %v225 = vpop.permute.xlu0 %224
    %226 = vrot.lane.b32.xlu0 %v221, 17
    %v227 = vpop.permute.xlu0 %226
    %228 = vrot.lane.b32.xlu0 %v222, 17
    %v229 = vpop.permute.xlu0 %228
    %230 = vrot.lane.b32.xlu0 %v223, 17
    %v231 = vpop.permute.xlu0 %230
    %vm232 = vcmp.lt.s32.totalorder %v23, 17
    %v233 = vsel %vm232, %v229, %v231
    %v234 = vsel %vm232, %v227, %v229
    %v235 = vsel %vm232, %v225, %v227
    %v236 = vsel %vm232, %v231, %v225
    %v237 = vmul.f32 %v236, %v139
    %v238 = vmul.f32 %v235, %v140
    %v239 = vmul.f32 %v234, %v141
    %v240 = vmul.f32 %v233, %v142
    %241 = vrot.lane.b32.xlu0 %v220, 16
    %v242 = vpop.permute.xlu0 %241
    %243 = vrot.lane.b32.xlu0 %v221, 16
    %v244 = vpop.permute.xlu0 %243
    %245 = vrot.lane.b32.xlu0 %v222, 16
    %v246 = vpop.permute.xlu0 %245
    %247 = vrot.lane.b32.xlu0 %v223, 16
    %v248 = vpop.permute.xlu0 %247
    %vm249 = vcmp.lt.s32.totalorder %v23, 16
    %v250 = vsel %vm249, %v246, %v248
    %v251 = vsel %vm249, %v244, %v246
    %v252 = vsel %vm249, %v242, %v244
    %v253 = vsel %vm249, %v248, %v242
    %v254 = vmul.f32 %v253, %v147
    %v255 = vmul.f32 %v252, %v148
    %v256 = vmul.f32 %v251, %v149
    %v257 = vmul.f32 %v250, %v150
    %258 = vrot.lane.b32.xlu0 %v220, 15
    %v259 = vpop.permute.xlu0 %258
    %260 = vrot.lane.b32.xlu0 %v221, 15
    %v261 = vpop.permute.xlu0 %260
    %262 = vrot.lane.b32.xlu0 %v222, 15
    %v263 = vpop.permute.xlu0 %262
    %264 = vrot.lane.b32.xlu0 %v223, 15
    %v265 = vpop.permute.xlu0 %264
    %vm266 = vcmp.lt.s32.totalorder %v23, 15
    %v267 = vsel %vm266, %v263, %v265
    %v268 = vsel %vm266, %v261, %v263
    %v269 = vsel %vm266, %v259, %v261
    %v270 = vsel %vm266, %v265, %v259
    %v271 = vmul.f32 %v270, %v163
    %v272 = vmul.f32 %v269, %v164
    %v273 = vmul.f32 %v268, %v165
    %v274 = vmul.f32 %v267, %v166
    %275 = vrot.lane.b32.xlu0 %v220, 1
    %v276 = vpop.permute.xlu0 %275
    %277 = vrot.lane.b32.xlu0 %v221, 1
    %v278 = vpop.permute.xlu0 %277
    %279 = vrot.lane.b32.xlu0 %v222, 1
    %v280 = vpop.permute.xlu0 %279
    %281 = vrot.lane.b32.xlu0 %v223, 1
    %v282 = vpop.permute.xlu0 %281
    %vm283 = vcmp.lt.s32.totalorder %v23, 1
    %v284 = vsel %vm283, %v280, %v282
    %v285 = vsel %vm283, %v278, %v280
    %v286 = vsel %vm283, %v276, %v278
    %v287 = vsel %vm283, %v282, %v276
    %v288 = vmul.f32 %v287, %v171
    %v289 = vmul.f32 %v286, %v172
    %v290 = vmul.f32 %v285, %v173
    %v291 = vmul.f32 %v284, %v174
    %292 = vrot.lane.b32.xlu0 %v220, 127
    %v293 = vpop.permute.xlu0 %292
    %294 = vrot.lane.b32.xlu0 %v221, 127
    %v295 = vpop.permute.xlu0 %294
    %296 = vrot.lane.b32.xlu0 %v222, 127
    %v297 = vpop.permute.xlu0 %296
    %298 = vrot.lane.b32.xlu0 %v223, 127
    %v299 = vpop.permute.xlu0 %298
    %vm300 = vcmp.lt.s32.totalorder %v23, 127
    %v301 = vsel %vm300, %v297, %v299
    %v302 = vsel %vm300, %v295, %v297
    %v303 = vsel %vm300, %v293, %v295
    %v304 = vsel %vm300, %v299, %v293
    %v305 = vmul.f32 %v303, %v179
    %v306 = vmul.f32 %v302, %v180
    %v307 = vmul.f32 %v301, %v181
    %v308 = vmul.f32 %v304, %v182
    %309 = vrot.lane.b32.xlu0 %v220, 113
    %v310 = vpop.permute.xlu0 %309
    %311 = vrot.lane.b32.xlu0 %v221, 113
    %v312 = vpop.permute.xlu0 %311
    %313 = vrot.lane.b32.xlu0 %v222, 113
    %v314 = vpop.permute.xlu0 %313
    %315 = vrot.lane.b32.xlu0 %v223, 113
    %v316 = vpop.permute.xlu0 %315
    %vm317 = vcmp.lt.s32.totalorder %v23, 113
    %v318 = vsel %vm317, %v314, %v316
    %v319 = vsel %vm317, %v312, %v314
    %v320 = vsel %vm317, %v310, %v312
    %v321 = vsel %vm317, %v316, %v310
    %v322 = vmul.f32 %v320, %v195
    %v323 = vmul.f32 %v319, %v196
    %v324 = vmul.f32 %v318, %v197
    %v325 = vmul.f32 %v321, %v198
    %326 = vrot.lane.b32.xlu0 %v220, 112
    %v327 = vpop.permute.xlu0 %326
    %328 = vrot.lane.b32.xlu0 %v221, 112
    %v329 = vpop.permute.xlu0 %328
    %330 = vrot.lane.b32.xlu0 %v222, 112
    %v331 = vpop.permute.xlu0 %330
    %332 = vrot.lane.b32.xlu0 %v223, 112
    %v333 = vpop.permute.xlu0 %332
    %vm334 = vcmp.lt.s32.totalorder %v23, 112
    %v335 = vsel %vm334, %v331, %v333
    %v336 = vsel %vm334, %v329, %v331
    %v337 = vsel %vm334, %v327, %v329
    %v338 = vsel %vm334, %v333, %v327
    %v339 = vmul.f32 %v337, %v203
    %v340 = vmul.f32 %v336, %v204
    %v341 = vmul.f32 %v335, %v205
    %v342 = vmul.f32 %v338, %v206
    %343 = vrot.lane.b32.xlu0 %v220, 111
    %v344 = vpop.permute.xlu0 %343
    %345 = vrot.lane.b32.xlu0 %v221, 111
    %v346 = vpop.permute.xlu0 %345
    %347 = vrot.lane.b32.xlu0 %v222, 111
    %v348 = vpop.permute.xlu0 %347
    %349 = vrot.lane.b32.xlu0 %v223, 111
    %v350 = vpop.permute.xlu0 %349
    %vm351 = vcmp.lt.s32.totalorder %v23, 111
    %v352 = vsel %vm351, %v348, %v350
    %v353 = vsel %vm351, %v346, %v348
    %v354 = vsel %vm351, %v344, %v346
    %v355 = vsel %vm351, %v350, %v344
    %v356 = vmul.f32 %v354, %v215
    %v357 = vmul.f32 %v353, %v216
    %v358 = vmul.f32 %v352, %v217
    %v359 = vmul.f32 %v355, %v218
    %v360 = vpack.c.bf16 %v254, %v237
    %v361 = vpack.c.bf16 %v255, %v238
    %v362 = vpack.c.bf16 %v256, %v239
    %v363 = vpack.c.bf16 %v257, %v240
    %v364 = vpack.c.bf16 %v288, %v271
    %v365 = vpack.c.bf16 %v289, %v272
    %v366 = vpack.c.bf16 %v290, %v273
    %v367 = vpack.c.bf16 %v291, %v274
    %v368 = vpack.c.bf16 %v305, %v220
    %v369 = vpack.c.bf16 %v306, %v221
    %v370 = vpack.c.bf16 %v307, %v222
    %v371 = vpack.c.bf16 %v308, %v223
    %v372 = vpack.c.bf16 %v339, %v322
    %v373 = vpack.c.bf16 %v340, %v323
    %v374 = vpack.c.bf16 %v341, %v324
    %v375 = vpack.c.bf16 %v342, %v325
    %v376 = vpack.c.bf16 %v356, %v356
    %v377 = vpack.c.bf16 %v357, %v357
    %v378 = vpack.c.bf16 %v358, %v358
    %v379 = vpack.c.bf16 %v359, %v359
    %vm380 = vcmask 588800
    %v382 = vsel %vm380, %v219, 0
    %vm384 = vcmask 1043456
    %v386 = vsel %vm384, %v376, 0
    %v389 = vsel %vm384, %v377, 0
    %v392 = vsel %vm384, %v378, 0
    %v395 = vsel %vm384, %v379, 0
    %397 = vmatpush.bf16.msra.mxu0 0
    %398 = vmatpush.bf16.msra.mxu0 0
    %399 = vmatpush.bf16.msra.mxu0 0
    %400 = vmatpush.bf16.msra.mxu0 %v386
    %401 = vmatpush.bf16.msra.mxu0 %v372
    %402 = vmatpush.bf16.msra.mxu0 %v368
    %403 = vmatpush.bf16.msra.mxu0 %v364
    %404 = vmatpush.bf16.msra.mxu0 %v360
    %405 = vmatmul.bf16.gmra.mxu0 %v382
    %v406 = vpop.f32.mrf.mxu0
    %v407 = vadd.f32 0.0, %v406
    %v408 = vpop.f32.mrf.mxu0
    %409 = vdwg.mxu0
    %410 = vmatpush.bf16.msra.mxu0 0
    %411 = vmatpush.bf16.msra.mxu0 0
    %412 = vmatpush.bf16.msra.mxu0 0
    %413 = vmatpush.bf16.msra.mxu0 %v389
    %414 = vmatpush.bf16.msra.mxu0 %v373
    %415 = vmatpush.bf16.msra.mxu0 %v369
    %416 = vmatpush.bf16.msra.mxu0 %v365
    %417 = vmatpush.bf16.msra.mxu0 %v361
    %418 = vmatmul.bf16.gmra.mxu0 %v382
    %v419 = vpop.f32.mrf.mxu0
    %v420 = vadd.f32 0.0, %v419
    %v421 = vpop.f32.mrf.mxu0
    %422 = vdwg.mxu0
    %423 = vmatpush.bf16.msra.mxu0 0
    %424 = vmatpush.bf16.msra.mxu0 0
    %425 = vmatpush.bf16.msra.mxu0 0
    %426 = vmatpush.bf16.msra.mxu0 %v392
    %427 = vmatpush.bf16.msra.mxu0 %v374
    %428 = vmatpush.bf16.msra.mxu0 %v370
    %429 = vmatpush.bf16.msra.mxu0 %v366
    %430 = vmatpush.bf16.msra.mxu0 %v362
    %431 = vmatmul.bf16.gmra.mxu0 %v382
    %v432 = vpop.f32.mrf.mxu0
    %v433 = vadd.f32 0.0, %v432
    %v434 = vpop.f32.mrf.mxu0
    %435 = vdwg.mxu0
    %436 = vmatpush.bf16.msra.mxu0 0
    %437 = vmatpush.bf16.msra.mxu0 0
    %438 = vmatpush.bf16.msra.mxu0 0
    %439 = vmatpush.bf16.msra.mxu0 %v395
    %440 = vmatpush.bf16.msra.mxu0 %v375
    %441 = vmatpush.bf16.msra.mxu0 %v371
    %442 = vmatpush.bf16.msra.mxu0 %v367
    %443 = vmatpush.bf16.msra.mxu0 %v363
    %444 = vmatmul.bf16.gmra.mxu0 %v382
    %v445 = vpop.f32.mrf.mxu0
    %v446 = vadd.f32 0.0, %v445
    %v447 = vpop.f32.mrf.mxu0
    %448 = vdwg.mxu0
    %v449 = vld [vmem:[%s4] sm:$0xff]
    %s450 = scalar_lea.vmem %s4, 8
    %v451 = vld [vmem:[%s450] sm:$0xff]
    %v452 = vadd.f32 %v407, %v420
    %v453 = vadd.f32 %v452, %v433
    %v454 = vadd.f32 %v453, %v446
    %455 = vadd.xlane.f32.xlu0 %v454
    %v456 = vpop.xlane.xlu0 %455
    %v457 = vmul.f32 %v456, 0.001953125
    %v458 = vmul.f32 %v407, %v407
    %v459 = vmul.f32 %v420, %v420
    %v460 = vmul.f32 %v433, %v433
    %v461 = vmul.f32 %v446, %v446
    %v462 = vadd.f32 %v458, %v459
    %v463 = vadd.f32 %v462, %v460
    %v464 = vadd.f32 %v463, %v461
    %465 = vadd.xlane.f32.xlu0 %v464
    %v466 = vpop.xlane.xlu0 %465
    %v467 = vmul.f32 %v466, 0.001953125
    %v468 = vmul.f32 %v457, %v457
    %v469 = vsub.f32 %v467, %v468
    %v470 = vadd.f32 %v469, 1e-05
    %v471 = vrsqrt.pop %v470
    %v472 = vmul.f32 %v471, %v470
    %v473 = vmul.f32 %v472, %v471
    %v474 = vmul.f32 0.5, %v473
    %v475 = vsub.f32 1.5, %v474
    %v476 = vmul.f32 %v471, %v475
    %vm477 = vweird.f32 %v470
    %vm478 = vweird.f32 %v471
    %vm479 = vmor %vm477, %vm478
    %v480 = vsel %vm479, %v471, %v476
    %v481 = vmul.f32 %v449, %v480
    %v482 = vmul.f32 %v457, %v481
    %v483 = vsub.f32 %v451, %v482
    %485 = vset.pattern.permute.xlu0 0
    %486 = vperm.xlu0 %485, %v481
    %v487 = vpop.permute.xlu0 %486
    %v489 = vmul.f32 %v407, %v487
    %v490 = vmul.f32 %v420, %v487
    %v491 = vmul.f32 %v433, %v487
    %v492 = vmul.f32 %v446, %v487
    %494 = vset.pattern.permute.xlu0 0
    %495 = vperm.xlu0 %494, %v483
    %v496 = vpop.permute.xlu0 %495
    %v498 = vadd.f32 %v489, %v496
    %v499 = vadd.f32 %v490, %v496
    %v500 = vadd.f32 %v491, %v496
    %v501 = vadd.f32 %v492, %v496
    %v502 = vmax.f32 %v498, 0.0
    %v503 = vmax.f32 %v499, 0.0
    %v504 = vmax.f32 %v500, 0.0
    %v505 = vmax.f32 %v501, 0.0
    %v506 = vld [vmem:[%s2] sm:$0xf]
    %507 = vrot.lane.b32.xlu0 %v502, 17
    %v508 = vpop.permute.xlu0 %507
    %509 = vrot.lane.b32.xlu0 %v503, 17
    %v510 = vpop.permute.xlu0 %509
    %511 = vrot.lane.b32.xlu0 %v504, 17
    %v512 = vpop.permute.xlu0 %511
    %513 = vrot.lane.b32.xlu0 %v505, 17
    %v514 = vpop.permute.xlu0 %513
    %v515 = vsel %vm232, %v512, %v514
    %v516 = vsel %vm232, %v510, %v512
    %v517 = vsel %vm232, %v508, %v510
    %v518 = vsel %vm232, %v514, %v508
    %v519 = vmul.f32 %v518, %v139
    %v520 = vmul.f32 %v517, %v140
    %v521 = vmul.f32 %v516, %v141
    %v522 = vmul.f32 %v515, %v142
    %523 = vrot.lane.b32.xlu0 %v502, 16
    %v524 = vpop.permute.xlu0 %523
    %525 = vrot.lane.b32.xlu0 %v503, 16
    %v526 = vpop.permute.xlu0 %525
    %527 = vrot.lane.b32.xlu0 %v504, 16
    %v528 = vpop.permute.xlu0 %527
    %529 = vrot.lane.b32.xlu0 %v505, 16
    %v530 = vpop.permute.xlu0 %529
    %v531 = vsel %vm249, %v528, %v530
    %v532 = vsel %vm249, %v526, %v528
    %v533 = vsel %vm249, %v524, %v526
    %v534 = vsel %vm249, %v530, %v524
    %v535 = vmul.f32 %v534, %v147
    %v536 = vmul.f32 %v533, %v148
    %v537 = vmul.f32 %v532, %v149
    %v538 = vmul.f32 %v531, %v150
    %539 = vrot.lane.b32.xlu0 %v502, 15
    %v540 = vpop.permute.xlu0 %539
    %541 = vrot.lane.b32.xlu0 %v503, 15
    %v542 = vpop.permute.xlu0 %541
    %543 = vrot.lane.b32.xlu0 %v504, 15
    %v544 = vpop.permute.xlu0 %543
    %545 = vrot.lane.b32.xlu0 %v505, 15
    %v546 = vpop.permute.xlu0 %545
    %v547 = vsel %vm266, %v544, %v546
    %v548 = vsel %vm266, %v542, %v544
    %v549 = vsel %vm266, %v540, %v542
    %v550 = vsel %vm266, %v546, %v540
    %v551 = vmul.f32 %v550, %v163
    %v552 = vmul.f32 %v549, %v164
    %v553 = vmul.f32 %v548, %v165
    %v554 = vmul.f32 %v547, %v166
    %555 = vrot.lane.b32.xlu0 %v502, 1
    %v556 = vpop.permute.xlu0 %555
    %557 = vrot.lane.b32.xlu0 %v503, 1
    %v558 = vpop.permute.xlu0 %557
    %559 = vrot.lane.b32.xlu0 %v504, 1
    %v560 = vpop.permute.xlu0 %559
    %561 = vrot.lane.b32.xlu0 %v505, 1
    %v562 = vpop.permute.xlu0 %561
    %v563 = vsel %vm283, %v560, %v562
    %v564 = vsel %vm283, %v558, %v560
    %v565 = vsel %vm283, %v556, %v558
    %v566 = vsel %vm283, %v562, %v556
    %v567 = vmul.f32 %v566, %v171
    %v568 = vmul.f32 %v565, %v172
    %v569 = vmul.f32 %v564, %v173
    %v570 = vmul.f32 %v563, %v174
    %571 = vrot.lane.b32.xlu0 %v502, 127
    %v572 = vpop.permute.xlu0 %571
    %573 = vrot.lane.b32.xlu0 %v503, 127
    %v574 = vpop.permute.xlu0 %573
    %575 = vrot.lane.b32.xlu0 %v504, 127
    %v576 = vpop.permute.xlu0 %575
    %577 = vrot.lane.b32.xlu0 %v505, 127
    %v578 = vpop.permute.xlu0 %577
    %v579 = vsel %vm300, %v576, %v578
    %v580 = vsel %vm300, %v574, %v576
    %v581 = vsel %vm300, %v572, %v574
    %v582 = vsel %vm300, %v578, %v572
    %v583 = vmul.f32 %v581, %v179
    %v584 = vmul.f32 %v580, %v180
    %v585 = vmul.f32 %v579, %v181
    %v586 = vmul.f32 %v582, %v182
    %587 = vrot.lane.b32.xlu0 %v502, 113
    %v588 = vpop.permute.xlu0 %587
    %589 = vrot.lane.b32.xlu0 %v503, 113
    %v590 = vpop.permute.xlu0 %589
    %591 = vrot.lane.b32.xlu0 %v504, 113
    %v592 = vpop.permute.xlu0 %591
    %593 = vrot.lane.b32.xlu0 %v505, 113
    %v594 = vpop.permute.xlu0 %593
    %v595 = vsel %vm317, %v592, %v594
    %v596 = vsel %vm317, %v590, %v592
    %v597 = vsel %vm317, %v588, %v590
    %v598 = vsel %vm317, %v594, %v588
    %v599 = vmul.f32 %v597, %v195
    %v600 = vmul.f32 %v596, %v196
    %v601 = vmul.f32 %v595, %v197
    %v602 = vmul.f32 %v598, %v198
    %603 = vrot.lane.b32.xlu0 %v502, 112
    %v604 = vpop.permute.xlu0 %603
    %605 = vrot.lane.b32.xlu0 %v503, 112
    %v606 = vpop.permute.xlu0 %605
    %607 = vrot.lane.b32.xlu0 %v504, 112
    %v608 = vpop.permute.xlu0 %607
    %609 = vrot.lane.b32.xlu0 %v505, 112
    %v610 = vpop.permute.xlu0 %609
    %v611 = vsel %vm334, %v608, %v610
    %v612 = vsel %vm334, %v606, %v608
    %v613 = vsel %vm334, %v604, %v606
    %v614 = vsel %vm334, %v610, %v604
    %v615 = vmul.f32 %v613, %v203
    %v616 = vmul.f32 %v612, %v204
    %v617 = vmul.f32 %v611, %v205
    %v618 = vmul.f32 %v614, %v206
    %619 = vrot.lane.b32.xlu0 %v502, 111
    %v620 = vpop.permute.xlu0 %619
    %621 = vrot.lane.b32.xlu0 %v503, 111
    %v622 = vpop.permute.xlu0 %621
    %623 = vrot.lane.b32.xlu0 %v504, 111
    %v624 = vpop.permute.xlu0 %623
    %625 = vrot.lane.b32.xlu0 %v505, 111
    %v626 = vpop.permute.xlu0 %625
    %v627 = vsel %vm351, %v624, %v626
    %v628 = vsel %vm351, %v622, %v624
    %v629 = vsel %vm351, %v620, %v622
    %v630 = vsel %vm351, %v626, %v620
    %v631 = vmul.f32 %v629, %v215
    %v632 = vmul.f32 %v628, %v216
    %v633 = vmul.f32 %v627, %v217
    %v634 = vmul.f32 %v630, %v218
    %v635 = vpack.c.bf16 %v535, %v519
    %v636 = vpack.c.bf16 %v536, %v520
    %v637 = vpack.c.bf16 %v537, %v521
    %v638 = vpack.c.bf16 %v538, %v522
    %v639 = vpack.c.bf16 %v567, %v551
    %v640 = vpack.c.bf16 %v568, %v552
    %v641 = vpack.c.bf16 %v569, %v553
    %v642 = vpack.c.bf16 %v570, %v554
    %v643 = vpack.c.bf16 %v583, %v502
    %v644 = vpack.c.bf16 %v584, %v503
    %v645 = vpack.c.bf16 %v585, %v504
    %v646 = vpack.c.bf16 %v586, %v505
    %v647 = vpack.c.bf16 %v615, %v599
    %v648 = vpack.c.bf16 %v616, %v600
    %v649 = vpack.c.bf16 %v617, %v601
    %v650 = vpack.c.bf16 %v618, %v602
    %v651 = vpack.c.bf16 %v631, %v631
    %v652 = vpack.c.bf16 %v632, %v632
    %v653 = vpack.c.bf16 %v633, %v633
    %v654 = vpack.c.bf16 %v634, %v634
    %v656 = vsel %vm380, %v506, 0
    %v659 = vsel %vm384, %v651, 0
    %v662 = vsel %vm384, %v652, 0
    %v665 = vsel %vm384, %v653, 0
    %v668 = vsel %vm384, %v654, 0
    %670 = vmatpush.bf16.msra.mxu0 0
    %671 = vmatpush.bf16.msra.mxu0 0
    %672 = vmatpush.bf16.msra.mxu0 0
    %673 = vmatpush.bf16.msra.mxu0 %v659
    %674 = vmatpush.bf16.msra.mxu0 %v647
    %675 = vmatpush.bf16.msra.mxu0 %v643
    %676 = vmatpush.bf16.msra.mxu0 %v639
    %677 = vmatpush.bf16.msra.mxu0 %v635
    %678 = vmatmul.bf16.gmra.mxu0 %v656
    %v679 = vpop.f32.mrf.mxu0
    %v680 = vadd.f32 0.0, %v679
    %v681 = vpop.f32.mrf.mxu0
    %682 = vdwg.mxu0
    %683 = vmatpush.bf16.msra.mxu0 0
    %684 = vmatpush.bf16.msra.mxu0 0
    %685 = vmatpush.bf16.msra.mxu0 0
    %686 = vmatpush.bf16.msra.mxu0 %v662
    %687 = vmatpush.bf16.msra.mxu0 %v648
    %688 = vmatpush.bf16.msra.mxu0 %v644
    %689 = vmatpush.bf16.msra.mxu0 %v640
    %690 = vmatpush.bf16.msra.mxu0 %v636
    %691 = vmatmul.bf16.gmra.mxu0 %v656
    %v692 = vpop.f32.mrf.mxu0
    %v693 = vadd.f32 0.0, %v692
    %v694 = vpop.f32.mrf.mxu0
    %695 = vdwg.mxu0
    %696 = vmatpush.bf16.msra.mxu0 0
    %697 = vmatpush.bf16.msra.mxu0 0
    %698 = vmatpush.bf16.msra.mxu0 0
    %699 = vmatpush.bf16.msra.mxu0 %v665
    %700 = vmatpush.bf16.msra.mxu0 %v649
    %701 = vmatpush.bf16.msra.mxu0 %v645
    %702 = vmatpush.bf16.msra.mxu0 %v641
    %703 = vmatpush.bf16.msra.mxu0 %v637
    %704 = vmatmul.bf16.gmra.mxu0 %v656
    %v705 = vpop.f32.mrf.mxu0
    %v706 = vadd.f32 0.0, %v705
    %v707 = vpop.f32.mrf.mxu0
    %708 = vdwg.mxu0
    %709 = vmatpush.bf16.msra.mxu0 0
    %710 = vmatpush.bf16.msra.mxu0 0
    %711 = vmatpush.bf16.msra.mxu0 0
    %712 = vmatpush.bf16.msra.mxu0 %v668
    %713 = vmatpush.bf16.msra.mxu0 %v650
    %714 = vmatpush.bf16.msra.mxu0 %v646
    %715 = vmatpush.bf16.msra.mxu0 %v642
    %716 = vmatpush.bf16.msra.mxu0 %v638
    %717 = vmatmul.bf16.gmra.mxu0 %v656
    %v718 = vpop.f32.mrf.mxu0
    %v719 = vadd.f32 0.0, %v718
    %v720 = vpop.f32.mrf.mxu0
    %721 = vdwg.mxu0
    %s722 = scalar_lea.vmem %s4, 16
    %v723 = vld [vmem:[%s722] sm:$0xff]
    %s724 = scalar_lea.vmem %s4, 24
    %v725 = vld [vmem:[%s724] sm:$0xff]
    %v726 = vadd.f32 %v680, %v693
    %v727 = vadd.f32 %v726, %v706
    %v728 = vadd.f32 %v727, %v719
    %729 = vadd.xlane.f32.xlu0 %v728
    %v730 = vpop.xlane.xlu0 %729
    %v731 = vmul.f32 %v730, 0.001953125
    %v732 = vmul.f32 %v680, %v680
    %v733 = vmul.f32 %v693, %v693
    %v734 = vmul.f32 %v706, %v706
    %v735 = vmul.f32 %v719, %v719
    %v736 = vadd.f32 %v732, %v733
    %v737 = vadd.f32 %v736, %v734
    %v738 = vadd.f32 %v737, %v735
    %739 = vadd.xlane.f32.xlu0 %v738
    %v740 = vpop.xlane.xlu0 %739
    %v741 = vmul.f32 %v740, 0.001953125
    %v742 = vmul.f32 %v731, %v731
    %v743 = vsub.f32 %v741, %v742
    %v744 = vadd.f32 %v743, 1e-05
    %v745 = vrsqrt.pop %v744
    %v746 = vmul.f32 %v745, %v744
    %v747 = vmul.f32 %v746, %v745
    %v748 = vmul.f32 0.5, %v747
    %v749 = vsub.f32 1.5, %v748
    %v750 = vmul.f32 %v745, %v749
    %vm751 = vweird.f32 %v744
    %vm752 = vweird.f32 %v745
    %vm753 = vmor %vm751, %vm752
    %v754 = vsel %vm753, %v745, %v750
    %v755 = vmul.f32 %v723, %v754
    %v756 = vmul.f32 %v731, %v755
    %v757 = vsub.f32 %v725, %v756
    %759 = vset.pattern.permute.xlu0 0
    %760 = vperm.xlu0 %759, %v755
    %v761 = vpop.permute.xlu0 %760
    %v763 = vmul.f32 %v680, %v761
    %v764 = vmul.f32 %v693, %v761
    %v765 = vmul.f32 %v706, %v761
    %v766 = vmul.f32 %v719, %v761
    %768 = vset.pattern.permute.xlu0 0
    %769 = vperm.xlu0 %768, %v757
    %v770 = vpop.permute.xlu0 %769
    %v772 = vadd.f32 %v763, %v770
    %v773 = vadd.f32 %v764, %v770
    %v774 = vadd.f32 %v765, %v770
    %v775 = vadd.f32 %v766, %v770
    %v776 = vld [vmem:[%s3] sm:$0xf]
    %v777 = vpack.c.bf16 %v220, %v220
    %v778 = vpack.c.bf16 %v221, %v221
    %v779 = vpack.c.bf16 %v222, %v222
    %v780 = vpack.c.bf16 %v223, %v223
    %vm781 = vcmask 64512
    %v783 = vsel %vm781, %v776, 0
    %v786 = vsel %vm384, %v777, 0
    %v789 = vsel %vm384, %v778, 0
    %v792 = vsel %vm384, %v779, 0
    %v795 = vsel %vm384, %v780, 0
    %797 = vmatpush.bf16.msra.mxu0 0
    %798 = vmatpush.bf16.msra.mxu0 0
    %799 = vmatpush.bf16.msra.mxu0 0
    %800 = vmatpush.bf16.msra.mxu0 0
    %801 = vmatpush.bf16.msra.mxu0 0
    %802 = vmatpush.bf16.msra.mxu0 0
    %803 = vmatpush.bf16.msra.mxu0 0
    %804 = vmatpush.bf16.msra.mxu0 %v786
    %805 = vmatmul.bf16.gmra.mxu0 %v783
    %v806 = vpop.f32.mrf.mxu0
    %v807 = vadd.f32 0.0, %v806
    %v808 = vpop.f32.mrf.mxu0
    %809 = vdwg.mxu0
    %810 = vmatpush.bf16.msra.mxu0 0
    %811 = vmatpush.bf16.msra.mxu0 0
    %812 = vmatpush.bf16.msra.mxu0 0
    %813 = vmatpush.bf16.msra.mxu0 0
    %814 = vmatpush.bf16.msra.mxu0 0
    %815 = vmatpush.bf16.msra.mxu0 0
    %816 = vmatpush.bf16.msra.mxu0 0
    %817 = vmatpush.bf16.msra.mxu0 %v789
    %818 = vmatmul.bf16.gmra.mxu0 %v783
    %v819 = vpop.f32.mrf.mxu0
    %v820 = vadd.f32 0.0, %v819
    %v821 = vpop.f32.mrf.mxu0
    %822 = vdwg.mxu0
    %823 = vmatpush.bf16.msra.mxu0 0
    %824 = vmatpush.bf16.msra.mxu0 0
    %825 = vmatpush.bf16.msra.mxu0 0
    %826 = vmatpush.bf16.msra.mxu0 0
    %827 = vmatpush.bf16.msra.mxu0 0
    %828 = vmatpush.bf16.msra.mxu0 0
    %829 = vmatpush.bf16.msra.mxu0 0
    %830 = vmatpush.bf16.msra.mxu0 %v792
    %831 = vmatmul.bf16.gmra.mxu0 %v783
    %v832 = vpop.f32.mrf.mxu0
    %v833 = vadd.f32 0.0, %v832
    %v834 = vpop.f32.mrf.mxu0
    %835 = vdwg.mxu0
    %836 = vmatpush.bf16.msra.mxu0 0
    %837 = vmatpush.bf16.msra.mxu0 0
    %838 = vmatpush.bf16.msra.mxu0 0
    %839 = vmatpush.bf16.msra.mxu0 0
    %840 = vmatpush.bf16.msra.mxu0 0
    %841 = vmatpush.bf16.msra.mxu0 0
    %842 = vmatpush.bf16.msra.mxu0 0
    %843 = vmatpush.bf16.msra.mxu0 %v795
    %844 = vmatmul.bf16.gmra.mxu0 %v783
    %v845 = vpop.f32.mrf.mxu0
    %v846 = vadd.f32 0.0, %v845
    %v847 = vpop.f32.mrf.mxu0
    %848 = vdwg.mxu0
    %s849 = scalar_lea.vmem %s4, 32
    %v850 = vld [vmem:[%s849] sm:$0xff]
    %s851 = scalar_lea.vmem %s4, 40
    %v852 = vld [vmem:[%s851] sm:$0xff]
    %v853 = vadd.f32 %v807, %v820
    %v854 = vadd.f32 %v853, %v833
    %v855 = vadd.f32 %v854, %v846
    %856 = vadd.xlane.f32.xlu0 %v855
    %v857 = vpop.xlane.xlu0 %856
    %v858 = vmul.f32 %v857, 0.001953125
    %v859 = vmul.f32 %v807, %v807
    %v860 = vmul.f32 %v820, %v820
    %v861 = vmul.f32 %v833, %v833
    %v862 = vmul.f32 %v846, %v846
    %v863 = vadd.f32 %v859, %v860
    %v864 = vadd.f32 %v863, %v861
    %v865 = vadd.f32 %v864, %v862
    %866 = vadd.xlane.f32.xlu0 %v865
    %v867 = vpop.xlane.xlu0 %866
    %v868 = vmul.f32 %v867, 0.001953125
    %v869 = vmul.f32 %v858, %v858
    %v870 = vsub.f32 %v868, %v869
    %v871 = vadd.f32 %v870, 1e-05
    %v872 = vrsqrt.pop %v871
    %v873 = vmul.f32 %v872, %v871
    %v874 = vmul.f32 %v873, %v872
    %v875 = vmul.f32 0.5, %v874
    %v876 = vsub.f32 1.5, %v875
    %v877 = vmul.f32 %v872, %v876
    %vm878 = vweird.f32 %v871
    %vm879 = vweird.f32 %v872
    %vm880 = vmor %vm878, %vm879
    %v881 = vsel %vm880, %v872, %v877
    %v882 = vmul.f32 %v850, %v881
    %v883 = vmul.f32 %v858, %v882
    %v884 = vsub.f32 %v852, %v883
    %886 = vset.pattern.permute.xlu0 0
    %887 = vperm.xlu0 %886, %v882
    %v888 = vpop.permute.xlu0 %887
    %v890 = vmul.f32 %v807, %v888
    %v891 = vmul.f32 %v820, %v888
    %v892 = vmul.f32 %v833, %v888
    %v893 = vmul.f32 %v846, %v888
    %895 = vset.pattern.permute.xlu0 0
    %896 = vperm.xlu0 %895, %v884
    %v897 = vpop.permute.xlu0 %896
    %v899 = vadd.f32 %v890, %v897
    %v900 = vadd.f32 %v891, %v897
    %v901 = vadd.f32 %v892, %v897
    %v902 = vadd.f32 %v893, %v897
    %v903 = vadd.f32 %v772, %v899
    %v904 = vadd.f32 %v773, %v900
    %v905 = vadd.f32 %v774, %v901
    %v906 = vadd.f32 %v775, %v902
    %v907 = vmax.f32 %v903, 0.0
    %v908 = vmax.f32 %v904, 0.0
    %v909 = vmax.f32 %v905, 0.0
    %v910 = vmax.f32 %v906, 0.0
    %911 = vst [vmem:[#allocation2] sm:$0xff] %v907
    %912 = vst [vmem:[#allocation2 + $0x8] sm:$0xff] %v908
    %913 = vst [vmem:[#allocation2 + $0x10] sm:$0xff] %v909
    %914 = vst [vmem:[#allocation2 + $0x18] sm:$0xff] %v910
    // Predicated region
    $region22: #{tpu_custom_call.1} parent=1 // pred_check
      _
    $region23: #{tpu_custom_call.1} parent=1 // pred_check_branch
      %916 = sbr.rel (0) target = $region25
    $region24: #{tpu_custom_call.1} parent=1 // pred_region
      %918 = vsyncadd [#allocation3], 0
      %s920 = sshll.u32 [#allocation2], 4
      %s921 = int_to_ptr.vmem [resolvable:$true] %s920
      %s922 = sshll.u32 %s5, 4
      %s923 = int_to_ptr.hbm [resolvable:$true] %s922
      %925 = dma.vmem_to_hbm [thread:$0]  %s921, 512, %s923, [#allocation3]
    $region25: #{tpu_custom_call.1} parent=1 // pred_fallthru
      _
    // Predicated region
    $region26: #{tpu_custom_call.1} parent=1 // pred_check
      _
    $region27: #{tpu_custom_call.1} parent=1 // pred_check_branch
      %927 = sbr.rel (0) target = $region29
    $region28: #{tpu_custom_call.1} parent=1 // pred_region
      %929 = dma.done [#allocation3], 512
    $region29: #{tpu_custom_call.1} parent=1 // pred_fallthru
      _
    %930 = vsyncpa [#allocation3], 1

</llo_original>
